<compile_context>
chip_gen: v5e
topology: v5e:2x2
jax: 0.10.0
libtpu: 0.0.40
codegen_flags: <defaults>
</compile_context>

<pallas_src>
import functools

import jax
import jax.numpy as jnp
from jax.experimental import pallas as pl
from jax.experimental.pallas import tpu as pltpu


def _round_up(x, m):
    return ((x + m - 1) // m) * m


def _fcblock_kernel_single_k(x_ref, w_ref, b_ref, o_ref):
    # Whole reduction fits in one tile: matmul -> bias -> cast -> store.
    x = jnp.maximum(x_ref[...], 0.0)
    acc = jnp.dot(x, w_ref[...], preferred_element_type=jnp.float32)
    o_ref[...] = (acc + b_ref[...].astype(jnp.float32)).astype(o_ref.dtype)


def _fcblock_kernel_multi_k(x_ref, w_ref, b_ref, o_ref, acc_ref):
    k = pl.program_id(2)

    @pl.when(k == 0)
    def _init():
        acc_ref[...] = jnp.zeros_like(acc_ref)

    # ReLU on the (tm, tk) x tile is VPU filler under the MXU matmul.
    x = jnp.maximum(x_ref[...], 0.0)
    acc_ref[...] += jnp.dot(x, w_ref[...], preferred_element_type=jnp.float32)

    @pl.when(k == pl.num_programs(2) - 1)
    def _finalize():
        # Bias added exactly once, at the reduction finalize.
        o_ref[...] = (acc_ref[...] + b_ref[...].astype(jnp.float32)).astype(o_ref.dtype)


@functools.partial(jax.jit, static_argnames=("tm_max", "tn_max", "tk_max"))
def fc_block_forward(x, w_t, b, *, tm_max=256, tn_max=512, tk_max=512):
    """y = Linear(ReLU(x)); w_t is (in_dim, out_dim), b is (1, out_dim)."""
    batch, in_dim = x.shape
    out_dim = w_t.shape[1]

    # MXU/lane-friendly tiles, clamped to the (padded) problem size.
    tm = min(tm_max, _round_up(batch, 8))
    tn = min(tn_max, _round_up(out_dim, 128))
    tk = min(tk_max, _round_up(in_dim, 128))

    mp = _round_up(batch, tm)
    np_ = _round_up(out_dim, tn)
    kp = _round_up(in_dim, tk)

    # Zero padding is inert through ReLU + matmul; padded rows/cols sliced off.
    x_p = x if (mp == batch and kp == in_dim) else jnp.pad(
        x, ((0, mp - batch), (0, kp - in_dim)))
    w_p = w_t if (kp == in_dim and np_ == out_dim) else jnp.pad(
        w_t, ((0, kp - in_dim), (0, np_ - out_dim)))
    b_p = b if np_ == out_dim else jnp.pad(b, ((0, 0), (0, np_ - out_dim)))

    nk = kp // tk
    grid = (mp // tm, np_ // tn, nk)

    bytes_per = jnp.dtype(x.dtype).itemsize
    cost = pl.CostEstimate(
        flops=2 * batch * in_dim * out_dim,
        transcendentals=0,
        bytes_accessed=(batch * in_dim + in_dim * out_dim + out_dim
                        + batch * out_dim) * bytes_per,
    )

    # Per-step VMEM: double-buffered x/w/bias tiles + double-buffered output
    # tile (+ f32 accumulator scratch when K is tiled); request 2x headroom,
    # capped well under v7x's 64 MiB physical VMEM.
    acc_bytes = (tm * tn * 4) if nk > 1 else 0
    tile_bytes = (2 * (tm * tk + tk * tn + tn) * bytes_per
                  + 2 * tm * tn * bytes_per
                  + acc_bytes)
    vmem_limit = int(min(max(2 * tile_bytes, 16 * 1024 * 1024), 48 * 1024 * 1024))

    if nk == 1:
        kernel = _fcblock_kernel_single_k
        scratch_shapes = []
    else:
        kernel = _fcblock_kernel_multi_k
        scratch_shapes = [pltpu.VMEM((tm, tn), jnp.float32)]

    out_p = pl.pallas_call(
        kernel,
        out_shape=jax.ShapeDtypeStruct((mp, np_), x.dtype),
        grid_spec=pltpu.PrefetchScalarGridSpec(
            num_scalar_prefetch=0,
            grid=grid,
            in_specs=[
                pl.BlockSpec((tm, tk), lambda i, j, k: (i, k)),   # x tile
                pl.BlockSpec((tk, tn), lambda i, j, k: (k, j)),   # w_t tile
                pl.BlockSpec((1, tn), lambda i, j, k: (0, j)),    # bias tile
            ],
            out_specs=pl.BlockSpec((tm, tn), lambda i, j, k: (i, j)),
            scratch_shapes=scratch_shapes,
        ),
        compiler_params=pltpu.CompilerParams(
            dimension_semantics=("parallel", "parallel", "arbitrary"),
            vmem_limit_bytes=vmem_limit,
        ),
        cost_estimate=cost,
    )(x_p, w_p, b_p)

    if mp == batch and np_ == out_dim:
        return out_p
    return out_p[:batch, :out_dim]


def init_fcblock_params(key, in_dim, out_dim, dtype=jnp.float32):
    """Deterministic init mimicking torch.nn.Linear (uniform(-1/sqrt(in), 1/sqrt(in)))."""
    kw, kb = jax.random.split(key)
    bound = 1.0 / jnp.sqrt(jnp.asarray(in_dim, dtype))
    # Stored already transposed: (in_dim, out_dim) == torch_weight.T
    w_t = jax.random.uniform(kw, (in_dim, out_dim), dtype, minval=-bound, maxval=bound)
    b = jax.random.uniform(kb, (1, out_dim), dtype, minval=-bound, maxval=bound)
    return w_t, b


if __name__ == "__main__":
    key = jax.random.PRNGKey(0)
    k_x, k_p = jax.random.split(key)

    # Small shapes consistent with FCBlock(in_dim=32, out_dim=64), batch=8.
    batch, in_dim, out_dim = 8, 32, 64
    x = jax.random.normal(k_x, (batch, in_dim), jnp.float32)
    w_t, b = init_fcblock_params(k_p, in_dim, out_dim)

    y = fc_block_forward(x, w_t, b)
    y = jax.block_until_ready(y)

    # Pure-JAX reference of the PyTorch forward: Dropout(p=0)(Linear(ReLU(x)))
    y_ref = jnp.maximum(x, 0.0) @ w_t + b
    assert y.shape == (batch, out_dim)
    assert jnp.allclose(y, y_ref, atol=1e-5, rtol=1e-5), "mismatch vs reference"

    print("KERNEL_OK")
</pallas_src>

<mosaic_0001>
module attributes {stable_mosaic.version = 11 : i64} {
  func.func @_fcblock_kernel_single_k(%arg0: i32, %arg1: i32, %arg2: i32, %arg3: memref<8x128xf32, #tpu.memory_space<vmem>>, %arg4: memref<128x128xf32, #tpu.memory_space<vmem>>, %arg5: memref<1x128xf32, #tpu.memory_space<vmem>>, %arg6: memref<8x128xf32, #tpu.memory_space<vmem>>) attributes {dimension_semantics = [#tpu.dimension_semantics<parallel>, #tpu.dimension_semantics<parallel>, #tpu.dimension_semantics<arbitrary>], iteration_bounds = array<i64: 1, 1, 1>, scalar_prefetch = 0 : i64, scratch_operands = 0 : i64, tpu.core_type = #tpu.core_type<tc>, window_params = [{transform_indices = @transform_0, window_bounds = array<i64: 8, 128>}, {transform_indices = @transform_1, window_bounds = array<i64: 128, 128>}, {transform_indices = @transform_2, window_bounds = array<i64: 1, 128>}, {transform_indices = @transform_3, window_bounds = array<i64: 8, 128>}]} {
    %c0 = arith.constant 0 : index
    %c0_0 = arith.constant 0 : index
    %0 = vector.load %arg3[%c0, %c0_0] : memref<8x128xf32, #tpu.memory_space<vmem>>, vector<8x128xf32>
    %cst = arith.constant 0.000000e+00 : f32
    %1 = vector.broadcast %cst : f32 to vector<8x128xf32>
    %2 = arith.maximumf %0, %1 : vector<8x128xf32>
    %c0_1 = arith.constant 0 : index
    %c0_2 = arith.constant 0 : index
    %3 = vector.load %arg4[%c0_1, %c0_2] : memref<128x128xf32, #tpu.memory_space<vmem>>, vector<128x128xf32>
    %cst_3 = arith.constant dense<0.000000e+00> : vector<8x128xf32>
    %4 = tpu.matmul %2, %3, %cst_3 {dimension_numbers = #tpu.dot_dimension_numbers<[1], [0], [0], [1], [0, 0, 1, 1], [], []>} : vector<8x128xf32>, vector<128x128xf32>, vector<8x128xf32> -> vector<8x128xf32>
    %c0_4 = arith.constant 0 : index
    %c0_5 = arith.constant 0 : index
    %5 = vector.load %arg5[%c0_4, %c0_5] : memref<1x128xf32, #tpu.memory_space<vmem>>, vector<1x128xf32>
    %6 = vector.broadcast %5 : vector<1x128xf32> to vector<8x128xf32>
    %7 = arith.addf %4, %6 : vector<8x128xf32>
    %c0_6 = arith.constant 0 : index
    %c0_7 = arith.constant 0 : index
    %8 = vector.load %arg6[%c0_6, %c0_7] : memref<8x128xf32, #tpu.memory_space<vmem>>, vector<8x128xf32>
    tpu.vector_store %arg6[%c0_6, %c0_7], %7 {strides = array<i32>} : memref<8x128xf32, #tpu.memory_space<vmem>>, vector<8x128xf32>,
    return
  }
  func.func @transform_0(%arg0: i32, %arg1: i32, %arg2: i32) -> (i32, i32) {
    %c0_i32 = arith.constant 0 : i32
    return %arg0, %arg2 : i32, i32
  }
  func.func @transform_1(%arg0: i32, %arg1: i32, %arg2: i32) -> (i32, i32) {
    %c0_i32 = arith.constant 0 : i32
    return %arg2, %arg1 : i32, i32
  }
  func.func @transform_2(%arg0: i32, %arg1: i32, %arg2: i32) -> (i32, i32) {
    %c0_i32 = arith.constant 0 : i32
    %c0_i32_0 = arith.constant 0 : i32
    return %c0_i32, %arg1 : i32, i32
  }
  func.func @transform_3(%arg0: i32, %arg1: i32, %arg2: i32) -> (i32, i32) {
    %c0_i32 = arith.constant 0 : i32
    return %arg0, %arg1 : i32, i32
  }
}

</mosaic_0001>

<llo_original>
// kernel: fc_block_forward.1
$region0: #{fc_block_forward.1}
  #allocation0 [shape = 'u32[]', space=smem, size = 0x4, offset = 0x4, fixed_abs, tag = 'smem constant byte address 0x4 - core index']
  #allocation1 [shape = 'u32[72,128]{1,0:T(1,128)}', space=vmem, size = 0x9000, scoped, tag = 'internal scratch']
  %s0 = inlined_call_operand.vmem [shape: f32[8,128], index: 0, kind: input, shape index: {}]
  %s1 = inlined_call_operand.vmem [shape: f32[128,128], index: 1, kind: input, shape index: {}]
  %s2 = inlined_call_operand.vmem [shape: f32[1,128], index: 2, kind: input, shape index: {}]
  %s3 = inlined_call_operand.hbm [shape: f32[8,128], index: 3, kind: output, shape index: {}]
  %s4 = sld [smem:[#allocation0]]
  $region22: #{fc_block_forward.1} parent=0
    _
  %s6 = ssub.s32 1, %s4
  %s7 = scalar_select 0, %s6, %s4
  $region1: #{fc_block_forward.1} parent=0
    #allocation2 [shape = 'u8[4096]{0}', space=vmem, size = 0x1000, scoped, tag = 'output window, operand 0, single buffered']
    #allocation3 [shape = 's32[1]{0}', space=sflag, size = 0x4, scoped, tag = 'scoped memory for fc_block_forward.1']
    %8 = vsyncpa [#allocation3], 0
    // Predicated region
    $region2: #{fc_block_forward.1} parent=1 // pred_check
      _
    $region3: #{fc_block_forward.1} parent=1 // pred_check_branch
      %10 = sbr.rel (0) target = $region5
    $region4: #{fc_block_forward.1} parent=1 // pred_region
      _
    $region5: #{fc_block_forward.1} parent=1 // pred_fallthru
      _
    // Predicated region
    $region6: #{fc_block_forward.1} parent=1 // pred_check
      _
    $region7: #{fc_block_forward.1} parent=1 // pred_check_branch
      %12 = sbr.rel (0) target = $region9
    $region8: #{fc_block_forward.1} parent=1 // pred_region
      _
    $region9: #{fc_block_forward.1} parent=1 // pred_fallthru
      _
    // Predicated region
    $region10: #{fc_block_forward.1} parent=1 // pred_check
      _
    $region11: #{fc_block_forward.1} parent=1 // pred_check_branch
      %14 = sbr.rel (0) target = $region13
    $region12: #{fc_block_forward.1} parent=1 // pred_region
      _
    $region13: #{fc_block_forward.1} parent=1 // pred_fallthru
      _
    %v15 = vld [vmem:[%s0] sm:$0xff]
    %v16 = vmax.f32 %v15, 0.0
    %v17 = vld [vmem:[%s1] sm:$0xff]
    %v18 = vld [vmem:[%s1 + $0x8] sm:$0xff]
    %v19 = vld [vmem:[%s1 + $0x10] sm:$0xff]
    %v20 = vld [vmem:[%s1 + $0x18] sm:$0xff]
    %v21 = vld [vmem:[%s1 + $0x20] sm:$0xff]
    %v22 = vld [vmem:[%s1 + $0x28] sm:$0xff]
    %v23 = vld [vmem:[%s1 + $0x30] sm:$0xff]
    %v24 = vld [vmem:[%s1 + $0x38] sm:$0xff]
    %v25 = vld [vmem:[%s1 + $0x40] sm:$0xff]
    %v26 = vld [vmem:[%s1 + $0x48] sm:$0xff]
    %v27 = vld [vmem:[%s1 + $0x50] sm:$0xff]
    %v28 = vld [vmem:[%s1 + $0x58] sm:$0xff]
    %v29 = vld [vmem:[%s1 + $0x60] sm:$0xff]
    %v30 = vld [vmem:[%s1 + $0x68] sm:$0xff]
    %v31 = vld [vmem:[%s1 + $0x70] sm:$0xff]
    %v32 = vld [vmem:[%s1 + $0x78] sm:$0xff]
    %v33 = vld [vmem:[%s2] sm:$0x1]
    %v35 = vperm.slane %v33, 0
    %37 = vmatpush.msra.mxu0 %v32
    %38 = vmatpush.msra.mxu0 %v31
    %39 = vmatpush.msra.mxu0 %v30
    %40 = vmatpush.msra.mxu0 %v29
    %41 = vmatpush.msra.mxu0 %v28
    %42 = vmatpush.msra.mxu0 %v27
    %43 = vmatpush.msra.mxu0 %v26
    %44 = vmatpush.msra.mxu0 %v25
    %45 = vmatpush.msra.mxu0 %v24
    %46 = vmatpush.msra.mxu0 %v23
    %47 = vmatpush.msra.mxu0 %v22
    %48 = vmatpush.msra.mxu0 %v21
    %49 = vmatpush.msra.mxu0 %v20
    %50 = vmatpush.msra.mxu0 %v19
    %51 = vmatpush.msra.mxu0 %v18
    %52 = vmatpush.msra.mxu0 %v17
    %53 = vmatmul.f32.gmra.mxu0 %v16
    %v54 = vpop.f32.mrf.mxu0
    %v55 = vadd.f32 %v35, %v54
    %56 = vdwg.mxu0
    %57 = vst [vmem:[#allocation2] sm:$0xff] %v55
    // Predicated region
    $region14: #{fc_block_forward.1} parent=1 // pred_check
      _
    $region15: #{fc_block_forward.1} parent=1 // pred_check_branch
      %59 = sbr.rel (0) target = $region17
    $region16: #{fc_block_forward.1} parent=1 // pred_region
      %61 = vsyncadd [#allocation3], 0
      %s63 = sshll.u32 [#allocation2], 4
      %s64 = int_to_ptr.vmem [resolvable:$true] %s63
      %s65 = sshll.u32 %s3, 4
      %s66 = int_to_ptr.hbm [resolvable:$true] %s65
      %68 = dma.vmem_to_hbm [thread:$0]  %s64, 128, %s66, [#allocation3]
    $region17: #{fc_block_forward.1} parent=1 // pred_fallthru
      _
    // Predicated region
    $region18: #{fc_block_forward.1} parent=1 // pred_check
      _
    $region19: #{fc_block_forward.1} parent=1 // pred_check_branch
      %70 = sbr.rel (0) target = $region21
    $region20: #{fc_block_forward.1} parent=1 // pred_region
      %72 = dma.done [#allocation3], 128
    $region21: #{fc_block_forward.1} parent=1 // pred_fallthru
      _
    %73 = vsyncpa [#allocation3], 1

</llo_original>
